<compile_context>
chip_gen: v7x
topology: tpu7x:2x2x1
jax: 0.10.0
libtpu: 0.0.40
codegen_flags: <defaults>
</compile_context>

<pallas_src>
import functools

import jax
import jax.numpy as jnp
from jax import lax
from jax.experimental import pallas as pl
from jax.experimental.pallas import tpu as pltpu


_TILE_F32_BYTES = 4 * 1024 * 1024    # per input, per pipeline buffer (f32-equivalent)
_VMEM_LIMIT = 40 * 1024 * 1024       # < 64 MiB physical/TC (v7x); ample on v5e/v6e


def _round_up(v, m):
    return ((v + m - 1) // m) * m


def _pow2_floor(v):
    return 1 << (max(1, int(v)).bit_length() - 1)


def _as_2d(x):
    """Copy-free 2-D view for mse/mae (layout-preserving row-major reshapes only)."""
    n = x.size
    for lane in (512, 256, 128):
        if n % lane == 0:
            return x.reshape(n // lane, lane)       # lane-dense slab, free reshape
    if x.ndim >= 2:
        return x.reshape(-1, x.shape[-1])           # free; keep the last dim whole
    return x.reshape(1, n)


def _fold_cols_128(v):
    """Sum 128-wide lane groups (lane-aligned static slices -> pure VPU adds)."""
    c = v.shape[-1]
    if c <= 128 or c % 128 != 0:
        return v
    acc = v[:, 0:128]
    for g in range(1, c // 128):
        acc = acc + v[:, g * 128:(g + 1) * 128]
    return acc


def _fold_rows_to8(v):
    """Halving fold along rows down to 8 (rows is a power of two >= 8)."""
    r = v.shape[0]
    while r > 8:
        h = r // 2
        v = v[:h, :] + v[h:, :]
        r = h
    return v


# ----------------------------- kernels --------------------------------------


def _sum_whole_kernel(x_ref, y_ref, o_ref, *, mode):
    """Single-block sum((x-y)^2) or sum(|x-y|)."""
    x = x_ref[...].astype(jnp.float32)
    y = y_ref[...].astype(jnp.float32)
    d = x - y
    contrib = d * d if mode == "mse" else jnp.abs(d)
    o_ref[...] = jnp.sum(contrib).reshape(1, 1)


def _sum_tiled_kernel(x_ref, y_ref, o_ref, acc_ref, *, mode, tile_rows, valid_rows,
                      steps, maybe_ragged):
    """Per-core partial sum over a (core, step) grid; VPU-only steady state."""
    c = pl.program_id(0)
    i = pl.program_id(1)

    @pl.when(i == 0)
    def _init():
        acc_ref[...] = jnp.zeros_like(acc_ref)

    x = x_ref[...].astype(jnp.float32)
    y = y_ref[...].astype(jnp.float32)
    d = x - y
    contrib = d * d if mode == "mse" else jnp.abs(d)

    def _accumulate(v):
        acc_ref[...] += _fold_rows_to8(_fold_cols_128(v))

    if maybe_ragged:
        row0 = (c * steps + i) * tile_rows

        @pl.when(row0 + tile_rows <= valid_rows)      # interior tiles: no mask work
        def _full():
            _accumulate(contrib)

        @pl.when(row0 + tile_rows > valid_rows)       # only final / overflow tiles
        def _masked():
            rid = lax.broadcasted_iota(jnp.int32, (tile_rows, 1), 0) + row0
            # select (NOT multiply): rows past valid_rows hold undefined data.
            _accumulate(jnp.where(rid < valid_rows, contrib, 0.0))
    else:
        _accumulate(contrib)

    @pl.when(i == steps - 1)
    def _finalize():
        o_ref[...] = jnp.sum(acc_ref[...]).reshape(1, 1)


def _cosine_kernel(x_ref, y_ref, o_ref):
    """Per-row 1 - cosine similarity for a (TB, D) tile."""
    # TODO(synk): torch.nn.CosineSimilarity clamps each norm with eps before
    # dividing; we clamp the product of squared norms under an rsqrt, which only
    # differs for near-zero-norm rows.
    eps = 1e-8
    x = x_ref[...].astype(jnp.float32)
    y = y_ref[...].astype(jnp.float32)
    dot = jnp.sum(_fold_cols_128(x * y), axis=1, keepdims=True)
    nx2 = jnp.sum(_fold_cols_128(x * x), axis=1, keepdims=True)
    ny2 = jnp.sum(_fold_cols_128(y * y), axis=1, keepdims=True)
    cos = dot * lax.rsqrt(jnp.maximum(nx2 * ny2, eps * eps))
    o_ref[...] = 1.0 - cos


# ----------------------------- drivers ---------------------------------------


def _loss_jnp(x, y, loss_type):
    """Plain-XLA fallback for tiny / degenerate inputs."""
    xf = x.astype(jnp.float32)
    yf = y.astype(jnp.float32)
    if loss_type == "cosine":
        eps = 1e-8
        dot = jnp.sum(xf * yf, axis=1)
        n2 = jnp.sum(xf * xf, axis=1) * jnp.sum(yf * yf, axis=1)
        return 1.0 - dot * lax.rsqrt(jnp.maximum(n2, eps * eps))
    d = xf - yf
    return jnp.mean(d * d) if loss_type == "mse" else jnp.mean(jnp.abs(d))


def _mean_loss_pallas(x, y, mode, max_tile_rows):
    """mse / mae: tiled partial-sum accumulation; divide once in the wrapper."""
    n_valid = x.size
    x2d = _as_2d(x)
    y2d = _as_2d(y)
    rows, lane = x2d.shape
    lane_pad = _round_up(lane, 128)

    budget_rows = max(8, _TILE_F32_BYTES // (lane_pad * 4))
    tr = _pow2_floor(min(budget_rows, max_tile_rows))

    cost = pl.CostEstimate(flops=3 * n_valid, transcendentals=0,
                           bytes_accessed=int(x.nbytes) + int(y.nbytes) + 8)

    if rows <= tr:
        # One full-extent block (legal for any rows/lane: block == full array dims).
        if _round_up(rows, 8) * lane_pad * 4 > _TILE_F32_BYTES:
            return _loss_jnp(x, y, mode)   # degenerate shape (e.g. one enormous row)
        total = pl.pallas_call(
            functools.partial(_sum_whole_kernel, mode=mode),
            out_shape=jax.ShapeDtypeStruct((1, 1), jnp.float32),
            grid=(1,),
            in_specs=[pl.BlockSpec((rows, lane), lambda i: (0, 0)),
                      pl.BlockSpec((rows, lane), lambda i: (0, 0))],
            out_specs=pl.BlockSpec((1, 1), lambda i: (0, 0)),
            compiler_params=pltpu.CompilerParams(
                dimension_semantics=("arbitrary",),
                vmem_limit_bytes=_VMEM_LIMIT),
            cost_estimate=cost,
        )(x2d, y2d)
        return total[0, 0] / n_valid

    num_tiles = pl.cdiv(rows, tr)
    n_split = 2 if num_tiles >= 2 else 1          # split reduction over both TCs (v7x)
    steps = pl.cdiv(num_tiles, n_split)
    maybe_ragged = (n_split * steps * tr) != rows
    lane_fold = 128 if lane % 128 == 0 else lane
    last_tile = num_tiles - 1

    def in_map(c, i):
        # Clamp overflow grid points of the 2-way split to a valid tile; their
        # contribution is zeroed by the in-kernel row mask.
        return (jnp.minimum(c * steps + i, last_tile), 0)

    kernel = functools.partial(
        _sum_tiled_kernel, mode=mode, tile_rows=tr, valid_rows=rows,
        steps=steps, maybe_ragged=maybe_ragged)

    partials = pl.pallas_call(
        kernel,
        out_shape=jax.ShapeDtypeStruct((n_split, 1), jnp.float32),
        grid=(n_split, steps),
        in_specs=[pl.BlockSpec((tr, lane), in_map),
                  pl.BlockSpec((tr, lane), in_map)],
        out_specs=pl.BlockSpec((1, 1), lambda c, i: (c, 0)),   # per-core partial
        scratch_shapes=[pltpu.VMEM((8, lane_fold), jnp.float32)],
        compiler_params=pltpu.CompilerParams(
            dimension_semantics=("parallel", "arbitrary"),
            vmem_limit_bytes=_VMEM_LIMIT),
        cost_estimate=cost,
    )(x2d, y2d)
    return jnp.sum(partials) / n_valid


def _cosine_pallas(x, y, max_tile_rows):
    """cosine: B-tiled per-row loss, grid axis parallel (megacore)."""
    b, d = x.shape
    lane_pad = _round_up(d, 128)
    budget_rows = max(8, _TILE_F32_BYTES // (lane_pad * 4))
    tb = _pow2_floor(min(budget_rows, max_tile_rows))
    if b <= tb:
        tb = b
    if _round_up(tb, 8) * lane_pad * 4 > _TILE_F32_BYTES:
        return _loss_jnp(x, y, "cosine")           # degenerate: enormous feature dim
    num_tiles = pl.cdiv(b, tb)

    out = pl.pallas_call(
        _cosine_kernel,
        out_shape=jax.ShapeDtypeStruct((b, 1), jnp.float32),
        grid=(num_tiles,),
        in_specs=[pl.BlockSpec((tb, d), lambda i: (i, 0)),
                  pl.BlockSpec((tb, d), lambda i: (i, 0))],
        out_specs=pl.BlockSpec((tb, 1), lambda i: (i, 0)),
        compiler_params=pltpu.CompilerParams(
            dimension_semantics=("parallel",),
            vmem_limit_bytes=_VMEM_LIMIT),
        cost_estimate=pl.CostEstimate(
            flops=8 * b * d, transcendentals=b,
            bytes_accessed=int(x.nbytes) + int(y.nbytes) + 4 * b),
    )(x, y)
    return out.reshape(b)


# ----------------------------- module ----------------------------------------


class DirectionLoss:
    """JAX/Pallas port of criteria.clip_loss.DirectionLoss."""

    def __init__(self, loss_type="mse", *, min_pallas_elements=65536, max_tile_rows=8192):
        assert loss_type in ("mse", "cosine", "mae")
        self.loss_type = loss_type
        self.min_pallas_elements = int(min_pallas_elements)
        self.max_tile_rows = max(8, int(max_tile_rows))

    @functools.partial(jax.jit, static_argnums=0)
    def __call__(self, x, y):
        x = jnp.asarray(x)   # keep caller dtype: bf16 halves HBM traffic
        y = jnp.asarray(y)
        assert x.shape == y.shape
        if self.loss_type == "cosine":
            assert x.ndim == 2, "cosine DirectionLoss expects (B, D) inputs"
            if x.size < self.min_pallas_elements:
                return _loss_jnp(x, y, "cosine")
            return _cosine_pallas(x, y, self.max_tile_rows)
        if x.size < self.min_pallas_elements:
            return _loss_jnp(x, y, self.loss_type)
        return _mean_loss_pallas(x, y, self.loss_type, self.max_tile_rows)


# ------------------------------ main ------------------------------------------


if __name__ == "__main__":
    key = jax.random.PRNGKey(0)
    kx, ky = jax.random.split(key)

    def _ref(loss_type, x, y):
        xf, yf = x.astype(jnp.float32), y.astype(jnp.float32)
        if loss_type == "cosine":
            dot = jnp.sum(xf * yf, axis=1)
            nrm = jnp.linalg.norm(xf, axis=1) * jnp.linalg.norm(yf, axis=1)
            return 1.0 - dot / jnp.maximum(nrm, 1e-8)
        d = xf - yf
        return jnp.mean(d * d) if loss_type == "mse" else jnp.mean(jnp.abs(d))

    # 1) CLIP-direction-like shape (B, D=512), f32; force the Pallas path.
    B, D = 64, 512
    x = jax.random.normal(kx, (B, D), dtype=jnp.float32)
    y = jax.random.normal(ky, (B, D), dtype=jnp.float32)
    for t in ("mse", "mae", "cosine"):
        out = DirectionLoss(t, min_pallas_elements=0)(x, y)
        jax.block_until_ready(out)
        ref = _ref(t, x, y)
        assert out.shape == ref.shape, t
        assert jnp.allclose(out, ref, atol=1e-5, rtol=1e-4), t

    # 2) Tiny forced tiles: exercises the (2, steps) split grid, clamped overflow
    #    tiles, the ragged row mask and a non-128-multiple last dim.
    B2, D2 = 37, 48
    x2 = jax.random.normal(kx, (B2, D2), dtype=jnp.float32)
    y2 = jax.random.normal(ky, (B2, D2), dtype=jnp.float32)
    for t in ("mse", "mae", "cosine"):
        out = DirectionLoss(t, min_pallas_elements=0, max_tile_rows=8)(x2, y2)
        jax.block_until_ready(out)
        assert jnp.allclose(out, _ref(t, x2, y2), atol=1e-5, rtol=1e-4), t

    # 3) bf16 inputs flow into the multi-tile kernel unchanged (f32 math inside).
    xb, yb = x.astype(jnp.bfloat16), y.astype(jnp.bfloat16)
    out = DirectionLoss("mse", min_pallas_elements=0, max_tile_rows=16)(xb, yb)
    jax.block_until_ready(out)
    assert jnp.allclose(out, _ref("mse", xb, yb), atol=1e-5, rtol=1e-4)

    # 4) 4-D input for mse (torch MSELoss accepts any shape).
    x4 = jax.random.normal(kx, (2, 3, 5, 7), dtype=jnp.float32)
    y4 = jax.random.normal(ky, (2, 3, 5, 7), dtype=jnp.float32)
    out = DirectionLoss("mae", min_pallas_elements=0, max_tile_rows=8)(x4, y4)
    jax.block_until_ready(out)
    assert jnp.allclose(out, _ref("mae", x4, y4), atol=1e-5, rtol=1e-4)

    # 5) Tiny inputs take the plain-jnp fallback path with default thresholds.
    xs = jax.random.normal(kx, (8, 32), dtype=jnp.float32)
    ys = jax.random.normal(ky, (8, 32), dtype=jnp.float32)
    out = DirectionLoss("cosine")(xs, ys)
    jax.block_until_ready(out)
    assert jnp.allclose(out, _ref("cosine", xs, ys), atol=1e-5, rtol=1e-4)

    print("KERNEL_OK")
</pallas_src>

<mosaic_0001>
module attributes {stable_mosaic.version = 11 : i64} {
  func.func @_sum_whole_kernel(%arg0: i32, %arg1: memref<64x512xf32, #tpu.memory_space<vmem>>, %arg2: memref<64x512xf32, #tpu.memory_space<vmem>>, %arg3: memref<1x1xf32, #tpu.memory_space<vmem>>) attributes {dimension_semantics = [#tpu.dimension_semantics<arbitrary>], iteration_bounds = array<i64: 1>, scalar_prefetch = 0 : i64, scratch_operands = 0 : i64, tpu.core_type = #tpu.core_type<tc>, window_params = [{pipeline_mode = #tpu.pipeline_mode<synchronous>, transform_indices = @transform_0, window_bounds = array<i64: 64, 512>}, {pipeline_mode = #tpu.pipeline_mode<synchronous>, transform_indices = @transform_1, window_bounds = array<i64: 64, 512>}, {pipeline_mode = #tpu.pipeline_mode<synchronous>, transform_indices = @transform_2, window_bounds = array<i64: 1, 1>}]} {
    %c0 = arith.constant 0 : index
    %c0_0 = arith.constant 0 : index
    %0 = vector.load %arg1[%c0, %c0_0] : memref<64x512xf32, #tpu.memory_space<vmem>>, vector<64x512xf32>
    %c0_1 = arith.constant 0 : index
    %c0_2 = arith.constant 0 : index
    %1 = vector.load %arg2[%c0_1, %c0_2] : memref<64x512xf32, #tpu.memory_space<vmem>>, vector<64x512xf32>
    %2 = arith.subf %0, %1 : vector<64x512xf32>
    %3 = arith.mulf %2, %2 : vector<64x512xf32>
    %4 = vector.shape_cast %3 : vector<64x512xf32> to vector<1x64x512xf32>
    %cst = arith.constant dense<0.000000e+00> : vector<1xf32>
    %5 = vector.multi_reduction <add>, %4, %cst [1, 2] : vector<1x64x512xf32> to vector<1xf32>
    %6 = vector.shape_cast %5 : vector<1xf32> to vector<1x1x1xf32>
    %7 = vector.extract %6[0, 0, 0] : f32 from vector<1x1x1xf32>
    %8 = vector.broadcast %7 : f32 to vector<1x1xf32>
    %c0_3 = arith.constant 0 : index
    %c0_4 = arith.constant 0 : index
    %9 = vector.load %arg3[%c0_3, %c0_4] : memref<1x1xf32, #tpu.memory_space<vmem>>, vector<1x1xf32>
    tpu.vector_store %arg3[%c0_3, %c0_4], %8 {strides = array<i32>} : memref<1x1xf32, #tpu.memory_space<vmem>>, vector<1x1xf32>,
    return
  }
  func.func @transform_0(%arg0: i32) -> (i32, i32) {
    %c0_i32 = arith.constant 0 : i32
    %c0_i32_0 = arith.constant 0 : i32
    %c0_i32_1 = arith.constant 0 : i32
    return %c0_i32, %c0_i32_0 : i32, i32
  }
  func.func @transform_1(%arg0: i32) -> (i32, i32) {
    %c0_i32 = arith.constant 0 : i32
    %c0_i32_0 = arith.constant 0 : i32
    %c0_i32_1 = arith.constant 0 : i32
    return %c0_i32, %c0_i32_0 : i32, i32
  }
  func.func @transform_2(%arg0: i32) -> (i32, i32) {
    %c0_i32 = arith.constant 0 : i32
    %c0_i32_0 = arith.constant 0 : i32
    %c0_i32_1 = arith.constant 0 : i32
    return %c0_i32, %c0_i32_0 : i32, i32
  }
}

</mosaic_0001>

<llo_original>
// kernel: a_call__.1
$region0: #{a_call__.1}
  #allocation0 [shape = 'u32[]', space=smem, size = 0x4, offset = 0x4, fixed_abs, tag = 'smem constant byte address 0x4 - core index']
  #allocation1 [shape = 'u32[144,128]{1,0:T(1,128)}', space=vmem, size = 0x12000, scoped, tag = 'internal scratch']
  %s0 = inlined_call_operand.hbm [shape: f32[64,512], index: 0, kind: input, shape index: {}]
  %s1 = inlined_call_operand.hbm [shape: f32[64,512], index: 1, kind: input, shape index: {}]
  %s2 = inlined_call_operand.hbm [shape: f32[1,1], index: 2, kind: output, shape index: {}]
  %s3 = sld [smem:[#allocation0]]
  $region26: #{a_call__.1} parent=0
    _
  %s5 = ssub.s32 1, %s3
  %s6 = scalar_select 0, %s5, %s3
  $region1: #{a_call__.1} parent=0
    #allocation2 [shape = 'u8[131072]{0}', space=vmem, size = 0x20000, scoped, tag = 'input window, operand 0, single buffered']
    #allocation3 [shape = 's32[1]{0}', space=sflag, size = 0x4, scoped, tag = 'scoped memory for a_call__.1']
    #allocation4 [shape = 's32[1]{0}', space=sflag, size = 0x4, scoped, tag = 'scoped memory for a_call__.1']
    #allocation5 [shape = 'u8[131072]{0}', space=vmem, size = 0x20000, scoped, tag = 'input window, operand 1, single buffered']
    #allocation6 [shape = 's32[1]{0}', space=sflag, size = 0x4, scoped, tag = 'scoped memory for a_call__.1']
    #allocation7 [shape = 'u8[512]{0}', space=vmem, size = 0x400, scoped, tag = 'output window, operand 0, single buffered']
    %7 = vsyncpa [#allocation3], 0
    %8 = vsyncpa [#allocation6], 0
    %9 = vsyncpa [#allocation4], 0
    // Predicated region
    $region2: #{a_call__.1} parent=1 // pred_check
      _
    $region3: #{a_call__.1} parent=1 // pred_check_branch
      %11 = sbr.rel (0) target = $region5
    $region4: #{a_call__.1} parent=1 // pred_region
      %s13 = ssub.s32 4096, 4096
      %14 = vsyncadd [#allocation3], %s13
      %s15 = sshll.u32 [#allocation2], 4
      %s16 = int_to_ptr.vmem [resolvable:$true] %s15
      %21 = dma.hbm_to_vmem [thread:$0]  %s0, 4096, %s16, [#allocation3], 512, 512, 32
    $region5: #{a_call__.1} parent=1 // pred_fallthru
      _
    // Predicated region
    $region6: #{a_call__.1} parent=1 // pred_check
      _
    $region7: #{a_call__.1} parent=1 // pred_check_branch
      %23 = sbr.rel (0) target = $region9
    $region8: #{a_call__.1} parent=1 // pred_region
      %s25 = ssub.s32 4096, 4096
      %26 = vsyncadd [#allocation6], %s25
      %s27 = sshll.u32 [#allocation5], 4
      %s28 = int_to_ptr.vmem [resolvable:$true] %s27
      %33 = dma.hbm_to_vmem [thread:$0]  %s1, 4096, %s28, [#allocation6], 512, 512, 32
    $region9: #{a_call__.1} parent=1 // pred_fallthru
      _
    // Predicated region
    $region10: #{a_call__.1} parent=1 // pred_check
      _
    $region11: #{a_call__.1} parent=1 // pred_check_branch
      %35 = sbr.rel (0) target = $region13
    $region12: #{a_call__.1} parent=1 // pred_region
      %36 = dma.done [#allocation3], 4096
    $region13: #{a_call__.1} parent=1 // pred_fallthru
      _
    // Predicated region
    $region14: #{a_call__.1} parent=1 // pred_check
      _
    $region15: #{a_call__.1} parent=1 // pred_check_branch
      %38 = sbr.rel (0) target = $region17
    $region16: #{a_call__.1} parent=1 // pred_region
      %39 = dma.done [#allocation6], 4096
    $region17: #{a_call__.1} parent=1 // pred_fallthru
      _
    %v40 = vld [vmem:[#allocation2] sm:$0xff]
    %v41 = vld [vmem:[#allocation2 + $0x8] sm:$0xff]
    %v42 = vld [vmem:[#allocation2 + $0x10] sm:$0xff]
    %v43 = vld [vmem:[#allocation2 + $0x18] sm:$0xff]
    %v44 = vld [vmem:[#allocation2 + $0x20] sm:$0xff]
    %v45 = vld [vmem:[#allocation2 + $0x28] sm:$0xff]
    %v46 = vld [vmem:[#allocation2 + $0x30] sm:$0xff]
    %v47 = vld [vmem:[#allocation2 + $0x38] sm:$0xff]
    %v48 = vld [vmem:[#allocation2 + $0x40] sm:$0xff]
    %v49 = vld [vmem:[#allocation2 + $0x48] sm:$0xff]
    %v50 = vld [vmem:[#allocation2 + $0x50] sm:$0xff]
    %v51 = vld [vmem:[#allocation2 + $0x58] sm:$0xff]
    %v52 = vld [vmem:[#allocation2 + $0x60] sm:$0xff]
    %v53 = vld [vmem:[#allocation2 + $0x68] sm:$0xff]
    %v54 = vld [vmem:[#allocation2 + $0x70] sm:$0xff]
    %v55 = vld [vmem:[#allocation2 + $0x78] sm:$0xff]
    %v56 = vld [vmem:[#allocation2 + $0x80] sm:$0xff]
    %v57 = vld [vmem:[#allocation2 + $0x88] sm:$0xff]
    %v58 = vld [vmem:[#allocation2 + $0x90] sm:$0xff]
    %v59 = vld [vmem:[#allocation2 + $0x98] sm:$0xff]
    %v60 = vld [vmem:[#allocation2 + $0xa0] sm:$0xff]
    %v61 = vld [vmem:[#allocation2 + $0xa8] sm:$0xff]
    %v62 = vld [vmem:[#allocation2 + $0xb0] sm:$0xff]
    %v63 = vld [vmem:[#allocation2 + $0xb8] sm:$0xff]
    %v64 = vld [vmem:[#allocation2 + $0xc0] sm:$0xff]
    %v65 = vld [vmem:[#allocation2 + $0xc8] sm:$0xff]
    %v66 = vld [vmem:[#allocation2 + $0xd0] sm:$0xff]
    %v67 = vld [vmem:[#allocation2 + $0xd8] sm:$0xff]
    %v68 = vld [vmem:[#allocation2 + $0xe0] sm:$0xff]
    %v69 = vld [vmem:[#allocation2 + $0xe8] sm:$0xff]
    %v70 = vld [vmem:[#allocation2 + $0xf0] sm:$0xff]
    %v71 = vld [vmem:[#allocation2 + $0xf8] sm:$0xff]
    %v72 = vld [vmem:[#allocation5] sm:$0xff]
    %v73 = vld [vmem:[#allocation5 + $0x8] sm:$0xff]
    %v74 = vld [vmem:[#allocation5 + $0x10] sm:$0xff]
    %v75 = vld [vmem:[#allocation5 + $0x18] sm:$0xff]
    %v76 = vld [vmem:[#allocation5 + $0x20] sm:$0xff]
    %v77 = vld [vmem:[#allocation5 + $0x28] sm:$0xff]
    %v78 = vld [vmem:[#allocation5 + $0x30] sm:$0xff]
    %v79 = vld [vmem:[#allocation5 + $0x38] sm:$0xff]
    %v80 = vld [vmem:[#allocation5 + $0x40] sm:$0xff]
    %v81 = vld [vmem:[#allocation5 + $0x48] sm:$0xff]
    %v82 = vld [vmem:[#allocation5 + $0x50] sm:$0xff]
    %v83 = vld [vmem:[#allocation5 + $0x58] sm:$0xff]
    %v84 = vld [vmem:[#allocation5 + $0x60] sm:$0xff]
    %v85 = vld [vmem:[#allocation5 + $0x68] sm:$0xff]
    %v86 = vld [vmem:[#allocation5 + $0x70] sm:$0xff]
    %v87 = vld [vmem:[#allocation5 + $0x78] sm:$0xff]
    %v88 = vld [vmem:[#allocation5 + $0x80] sm:$0xff]
    %v89 = vld [vmem:[#allocation5 + $0x88] sm:$0xff]
    %v90 = vld [vmem:[#allocation5 + $0x90] sm:$0xff]
    %v91 = vld [vmem:[#allocation5 + $0x98] sm:$0xff]
    %v92 = vld [vmem:[#allocation5 + $0xa0] sm:$0xff]
    %v93 = vld [vmem:[#allocation5 + $0xa8] sm:$0xff]
    %v94 = vld [vmem:[#allocation5 + $0xb0] sm:$0xff]
    %v95 = vld [vmem:[#allocation5 + $0xb8] sm:$0xff]
    %v96 = vld [vmem:[#allocation5 + $0xc0] sm:$0xff]
    %v97 = vld [vmem:[#allocation5 + $0xc8] sm:$0xff]
    %v98 = vld [vmem:[#allocation5 + $0xd0] sm:$0xff]
    %v99 = vld [vmem:[#allocation5 + $0xd8] sm:$0xff]
    %v100 = vld [vmem:[#allocation5 + $0xe0] sm:$0xff]
    %v101 = vld [vmem:[#allocation5 + $0xe8] sm:$0xff]
    %v102 = vld [vmem:[#allocation5 + $0xf0] sm:$0xff]
    %v103 = vld [vmem:[#allocation5 + $0xf8] sm:$0xff]
    %v104 = vsub.f32 %v40, %v72
    %v105 = vsub.f32 %v41, %v73
    %v106 = vsub.f32 %v42, %v74
    %v107 = vsub.f32 %v43, %v75
    %v108 = vsub.f32 %v44, %v76
    %v109 = vsub.f32 %v45, %v77
    %v110 = vsub.f32 %v46, %v78
    %v111 = vsub.f32 %v47, %v79
    %v112 = vsub.f32 %v48, %v80
    %v113 = vsub.f32 %v49, %v81
    %v114 = vsub.f32 %v50, %v82
    %v115 = vsub.f32 %v51, %v83
    %v116 = vsub.f32 %v52, %v84
    %v117 = vsub.f32 %v53, %v85
    %v118 = vsub.f32 %v54, %v86
    %v119 = vsub.f32 %v55, %v87
    %v120 = vsub.f32 %v56, %v88
    %v121 = vsub.f32 %v57, %v89
    %v122 = vsub.f32 %v58, %v90
    %v123 = vsub.f32 %v59, %v91
    %v124 = vsub.f32 %v60, %v92
    %v125 = vsub.f32 %v61, %v93
    %v126 = vsub.f32 %v62, %v94
    %v127 = vsub.f32 %v63, %v95
    %v128 = vsub.f32 %v64, %v96
    %v129 = vsub.f32 %v65, %v97
    %v130 = vsub.f32 %v66, %v98
    %v131 = vsub.f32 %v67, %v99
    %v132 = vsub.f32 %v68, %v100
    %v133 = vsub.f32 %v69, %v101
    %v134 = vsub.f32 %v70, %v102
    %v135 = vsub.f32 %v71, %v103
    %v136 = vmul.f32 %v104, %v104
    %v137 = vmul.f32 %v105, %v105
    %v138 = vmul.f32 %v106, %v106
    %v139 = vmul.f32 %v107, %v107
    %v140 = vmul.f32 %v108, %v108
    %v141 = vmul.f32 %v109, %v109
    %v142 = vmul.f32 %v110, %v110
    %v143 = vmul.f32 %v111, %v111
    %v144 = vmul.f32 %v112, %v112
    %v145 = vmul.f32 %v113, %v113
    %v146 = vmul.f32 %v114, %v114
    %v147 = vmul.f32 %v115, %v115
    %v148 = vmul.f32 %v116, %v116
    %v149 = vmul.f32 %v117, %v117
    %v150 = vmul.f32 %v118, %v118
    %v151 = vmul.f32 %v119, %v119
    %v152 = vmul.f32 %v120, %v120
    %v153 = vmul.f32 %v121, %v121
    %v154 = vmul.f32 %v122, %v122
    %v155 = vmul.f32 %v123, %v123
    %v156 = vmul.f32 %v124, %v124
    %v157 = vmul.f32 %v125, %v125
    %v158 = vmul.f32 %v126, %v126
    %v159 = vmul.f32 %v127, %v127
    %v160 = vmul.f32 %v128, %v128
    %v161 = vmul.f32 %v129, %v129
    %v162 = vmul.f32 %v130, %v130
    %v163 = vmul.f32 %v131, %v131
    %v164 = vmul.f32 %v132, %v132
    %v165 = vmul.f32 %v133, %v133
    %v166 = vmul.f32 %v134, %v134
    %v167 = vmul.f32 %v135, %v135
    %v168 = vadd.f32 %v136, %v137
    %v169 = vadd.f32 %v168, %v138
    %v170 = vadd.f32 %v169, %v139
    %v171 = vadd.f32 %v170, %v140
    %v172 = vadd.f32 %v171, %v141
    %v173 = vadd.f32 %v172, %v142
    %v174 = vadd.f32 %v173, %v143
    %v175 = vadd.f32 %v174, %v144
    %v176 = vadd.f32 %v175, %v145
    %v177 = vadd.f32 %v176, %v146
    %v178 = vadd.f32 %v177, %v147
    %v179 = vadd.f32 %v178, %v148
    %v180 = vadd.f32 %v179, %v149
    %v181 = vadd.f32 %v180, %v150
    %v182 = vadd.f32 %v181, %v151
    %v183 = vadd.f32 %v182, %v152
    %v184 = vadd.f32 %v183, %v153
    %v185 = vadd.f32 %v184, %v154
    %v186 = vadd.f32 %v185, %v155
    %v187 = vadd.f32 %v186, %v156
    %v188 = vadd.f32 %v187, %v157
    %v189 = vadd.f32 %v188, %v158
    %v190 = vadd.f32 %v189, %v159
    %v191 = vadd.f32 %v190, %v160
    %v192 = vadd.f32 %v191, %v161
    %v193 = vadd.f32 %v192, %v162
    %v194 = vadd.f32 %v193, %v163
    %v195 = vadd.f32 %v194, %v164
    %v196 = vadd.f32 %v195, %v165
    %v197 = vadd.f32 %v196, %v166
    %v198 = vadd.f32 %v197, %v167
    %199 = vadd.xlane.f32.xlu0 %v198
    %v200 = vpop.xlane.xlu0 %199
    %v201 = vrot.slane %v200, 4
    %v202 = vadd.f32 %v200, %v201
    %v203 = vrot.slane %v202, 2
    %v204 = vadd.f32 %v202, %v203
    %v205 = vrot.slane %v204, 1
    %v206 = vadd.f32 %v204, %v205
    %s207 = vtos %v206
    %v208 = vstv %s207
    %vm209 = vcmask 0
    %210 = vst.msk [vmem:[#allocation7] sm:$0x1] %vm209, %v208
    // Predicated region
    $region18: #{a_call__.1} parent=1 // pred_check
      _
    $region19: #{a_call__.1} parent=1 // pred_check_branch
      %212 = sbr.rel (0) target = $region21
    $region20: #{a_call__.1} parent=1 // pred_region
      %s214 = ssub.s32 16, 16
      %215 = vsyncadd [#allocation4], %s214
      %s217 = sshll.u32 [#allocation7], 4
      %s218 = int_to_ptr.vmem [resolvable:$true] %s217
      %220 = dma.vmem_to_hbm [thread:$0]  %s218, 16, %s2, [#allocation4]
    $region21: #{a_call__.1} parent=1 // pred_fallthru
      _
    // Predicated region
    $region22: #{a_call__.1} parent=1 // pred_check
      _
    $region23: #{a_call__.1} parent=1 // pred_check_branch
      %222 = sbr.rel (0) target = $region25
    $region24: #{a_call__.1} parent=1 // pred_region
      %223 = dma.done [#allocation4], 16
    $region25: #{a_call__.1} parent=1 // pred_fallthru
      _
    %224 = vsyncpa [#allocation3], 1
    %225 = vsyncpa [#allocation6], 1
    %226 = vsyncpa [#allocation4], 1

</llo_original>
